<compile_context>
chip_gen: v7x
topology: tpu7x:2x2x1
jax: 0.10.0
libtpu: 0.0.40
codegen_flags: <defaults>
</compile_context>

<pallas_src>
import functools

import jax
import jax.numpy as jnp
from jax.experimental import pallas as pl
from jax.experimental.pallas import tpu as pltpu


def _gated_transition_kernel(
    z_ref,        # [tb, Z]
    w1_ref,       # [Z, 2T + Z]   = [w_gate_zh | w_prop_zh | w_loc]
    b1_ref,       # [1, 2T + Z]   = [b_gate_h  | b_prop_h  | b_loc]
    w2_ref,       # [2T, 2Z]      block-diag: [[w_gate_hz, 0], [0, w_prop_hz]]
    b2_ref,       # [1, 2Z]       = [b_gate_z | b_prop_z]
    w_sig_ref,    # [Z, Z]
    b_sig_ref,    # [1, Z]
    out_ref,      # [tb, 2Z]      = [loc | scale]
    *,
    z_dim,
    transition_dim,
):
    Z, T = z_dim, transition_dim
    z = z_ref[...]                                                    # [tb, Z]

    # ---- fused layer 1: one matmul produces gate-hidden, pm-hidden, z_loc ----
    h1 = (jnp.dot(z, w1_ref[...], preferred_element_type=jnp.float32)
          + b1_ref[...])                                              # [tb, 2T+Z]
    h_gate = jnp.maximum(h1[:, :T], 0.0)                              # relu, [tb, T]
    h_pm = jnp.maximum(h1[:, T:2 * T], 0.0)                           # relu, [tb, T]
    z_loc = h1[:, 2 * T:]                                             # [tb, Z]

    # ---- fused layer 2: block-diagonal weight, single 2T-lane contraction ----
    h2 = jnp.concatenate([h_gate, h_pm], axis=-1)                     # [tb, 2T]
    g2 = (jnp.dot(h2, w2_ref[...], preferred_element_type=jnp.float32)
          + b2_ref[...])                                              # [tb, 2Z]
    gate = jax.nn.sigmoid(g2[:, :Z])                                  # [tb, Z]
    proposed_mean = g2[:, Z:]                                         # [tb, Z]

    loc = (1.0 - gate) * z_loc + gate * proposed_mean                 # [tb, Z]

    # scale = softplus(lin_sig(relu(proposed_mean))).clamp(min=1e-4)
    sig_pre = (jnp.dot(jnp.maximum(proposed_mean, 0.0), w_sig_ref[...],
                       preferred_element_type=jnp.float32)
               + b_sig_ref[...])                                      # [tb, Z]
    scale = jnp.maximum(jax.nn.softplus(sig_pre), 1e-4)

    # packed, lane-denser output (single store / single output DMA)
    out_ref[...] = jnp.concatenate([loc, scale], axis=-1).astype(out_ref.dtype)


def pack_params(p):
    """Host-side, one-time packing of the 12 Linear params into 6 fused arrays."""
    Z, T = p["w_gate_zh"].shape
    dt = p["w_gate_zh"].dtype
    w1 = jnp.concatenate([p["w_gate_zh"], p["w_prop_zh"], p["w_loc"]], axis=1)  # [Z, 2T+Z]
    b1 = jnp.concatenate([p["b_gate_h"], p["b_prop_h"], p["b_loc"]], axis=1)    # [1, 2T+Z]
    w2 = jnp.zeros((2 * T, 2 * Z), dtype=dt)
    w2 = w2.at[:T, :Z].set(p["w_gate_hz"])
    w2 = w2.at[T:, Z:].set(p["w_prop_hz"])                                      # [2T, 2Z]
    b2 = jnp.concatenate([p["b_gate_z"], p["b_prop_z"]], axis=1)                # [1, 2Z]
    return dict(w1=w1, b1=b1, w2=w2, b2=b2, w_sig=p["w_sig"], b_sig=p["b_sig"],
                z_dim=Z, transition_dim=T)


def gated_transition(z_t_1, packed, *, tile_b=None):
    """Pallas forward of GatedTransition. z_t_1: [B, Z]. Returns (loc, scale)."""
    B, Z = z_t_1.shape
    T = packed["transition_dim"]
    assert packed["z_dim"] == Z

    # Collapse the grid to a single step by default: everything fits in VMEM
    # and per-step overhead dominates at these shapes. tile_b can be set
    # (multiple of 8) to tile the batch axis for large B.
    if tile_b is None or tile_b >= B:
        tile_b = B
    assert B % tile_b == 0, "pad the batch to a multiple of tile_b"
    grid = (B // tile_b,)

    def param_spec(shape):
        return pl.BlockSpec(shape, lambda i: (0,) * len(shape))

    z_spec = pl.BlockSpec((tile_b, Z), lambda i: (i, 0))
    out_spec = pl.BlockSpec((tile_b, 2 * Z), lambda i: (i, 0))

    in_specs = [
        z_spec,
        param_spec((Z, 2 * T + Z)), param_spec((1, 2 * T + Z)),
        param_spec((2 * T, 2 * Z)), param_spec((1, 2 * Z)),
        param_spec((Z, Z)), param_spec((1, Z)),
    ]
    args = [z_t_1, packed["w1"], packed["b1"], packed["w2"], packed["b2"],
            packed["w_sig"], packed["b_sig"]]

    kernel = functools.partial(
        _gated_transition_kernel, z_dim=Z, transition_dim=T)

    out = pl.pallas_call(
        kernel,
        out_shape=jax.ShapeDtypeStruct((B, 2 * Z), z_t_1.dtype),
        grid_spec=pltpu.PrefetchScalarGridSpec(
            num_scalar_prefetch=0,
            grid=grid,
            in_specs=in_specs,
            out_specs=out_spec,
        ),
        compiler_params=pltpu.CompilerParams(
            dimension_semantics=("parallel",)),
    )(*args)

    loc, scale = out[:, :Z], out[:, Z:]
    return loc, scale


def init_params(key, z_dim, transition_dim, dtype=jnp.float32):
    """Deterministic init mimicking nn.Linear defaults (U(-1/sqrt(fan_in), +)).

    Weights are stored transposed, i.e. shape [in_dim, out_dim].
    lin_z_to_loc is identity weight / zero bias, as in the PyTorch module.
    """
    keys = jax.random.split(key, 10)

    def lin(kw, kb, fan_in, fan_out):
        bound = 1.0 / jnp.sqrt(fan_in)
        w = jax.random.uniform(kw, (fan_in, fan_out), dtype, -bound, bound)
        b = jax.random.uniform(kb, (1, fan_out), dtype, -bound, bound)
        return w, b

    w_gate_zh, b_gate_h = lin(keys[0], keys[1], z_dim, transition_dim)
    w_gate_hz, b_gate_z = lin(keys[2], keys[3], transition_dim, z_dim)
    w_prop_zh, b_prop_h = lin(keys[4], keys[5], z_dim, transition_dim)
    w_prop_hz, b_prop_z = lin(keys[6], keys[7], transition_dim, z_dim)
    w_sig, b_sig = lin(keys[8], keys[9], z_dim, z_dim)
    w_loc = jnp.eye(z_dim, dtype=dtype)          # identity (transpose of eye is eye)
    b_loc = jnp.zeros((1, z_dim), dtype=dtype)

    return dict(
        w_gate_zh=w_gate_zh, b_gate_h=b_gate_h,
        w_gate_hz=w_gate_hz, b_gate_z=b_gate_z,
        w_prop_zh=w_prop_zh, b_prop_h=b_prop_h,
        w_prop_hz=w_prop_hz, b_prop_z=b_prop_z,
        w_sig=w_sig, b_sig=b_sig,
        w_loc=w_loc, b_loc=b_loc,
    )


def _reference(z, p):
    """Pure-JAX reference of the PyTorch forward, for sanity checking."""
    _gate = jax.nn.relu(z @ p["w_gate_zh"] + p["b_gate_h"])
    gate = jax.nn.sigmoid(_gate @ p["w_gate_hz"] + p["b_gate_z"])
    _pm = jax.nn.relu(z @ p["w_prop_zh"] + p["b_prop_h"])
    pm = _pm @ p["w_prop_hz"] + p["b_prop_z"]
    loc = (1 - gate) * (z @ p["w_loc"] + p["b_loc"]) + gate * pm
    scale = jnp.maximum(jax.nn.softplus(jax.nn.relu(pm) @ p["w_sig"] + p["b_sig"]), 1e-4)
    return loc, scale


if __name__ == "__main__":
    batch = 16
    z_dim = 32
    transition_dim = 64

    key = jax.random.PRNGKey(0)
    k_z, k_p = jax.random.split(key)
    z_t_1 = jax.random.normal(k_z, (batch, z_dim), jnp.float32)
    params = init_params(k_p, z_dim, transition_dim)
    packed = jax.tree_util.tree_map(
        lambda x: x, pack_params(params))       # pack once on the host

    loc, scale = gated_transition(z_t_1, packed)
    jax.block_until_ready((loc, scale))

    ref_loc, ref_scale = _reference(z_t_1, params)
    assert jnp.allclose(loc, ref_loc, atol=1e-5, rtol=1e-5)
    assert jnp.allclose(scale, ref_scale, atol=1e-5, rtol=1e-5)

    print("KERNEL_OK")
</pallas_src>

<mosaic_0001>
module attributes {stable_mosaic.version = 11 : i64} {
  func.func @_gated_transition_kernel(%arg0: i32, %arg1: memref<16x32xf32, #tpu.memory_space<vmem>>, %arg2: memref<32x160xf32, #tpu.memory_space<vmem>>, %arg3: memref<1x160xf32, #tpu.memory_space<vmem>>, %arg4: memref<128x64xf32, #tpu.memory_space<vmem>>, %arg5: memref<1x64xf32, #tpu.memory_space<vmem>>, %arg6: memref<32x32xf32, #tpu.memory_space<vmem>>, %arg7: memref<1x32xf32, #tpu.memory_space<vmem>>, %arg8: memref<16x64xf32, #tpu.memory_space<vmem>>) attributes {dimension_semantics = [#tpu.dimension_semantics<parallel>], iteration_bounds = array<i64: 1>, scalar_prefetch = 0 : i64, scratch_operands = 0 : i64, tpu.core_type = #tpu.core_type<tc>, window_params = [{transform_indices = @transform_0, window_bounds = array<i64: 16, 32>}, {pipeline_mode = #tpu.pipeline_mode<synchronous>, transform_indices = @transform_1, window_bounds = array<i64: 32, 160>}, {pipeline_mode = #tpu.pipeline_mode<synchronous>, transform_indices = @transform_2, window_bounds = array<i64: 1, 160>}, {pipeline_mode = #tpu.pipeline_mode<synchronous>, transform_indices = @transform_3, window_bounds = array<i64: 128, 64>}, {pipeline_mode = #tpu.pipeline_mode<synchronous>, transform_indices = @transform_4, window_bounds = array<i64: 1, 64>}, {pipeline_mode = #tpu.pipeline_mode<synchronous>, transform_indices = @transform_5, window_bounds = array<i64: 32, 32>}, {pipeline_mode = #tpu.pipeline_mode<synchronous>, transform_indices = @transform_6, window_bounds = array<i64: 1, 32>}, {transform_indices = @transform_7, window_bounds = array<i64: 16, 64>}]} {
    %c0 = arith.constant 0 : index
    %c0_0 = arith.constant 0 : index
    %0 = vector.load %arg1[%c0, %c0_0] : memref<16x32xf32, #tpu.memory_space<vmem>>, vector<16x32xf32>
    %c0_1 = arith.constant 0 : index
    %c0_2 = arith.constant 0 : index
    %1 = vector.load %arg2[%c0_1, %c0_2] : memref<32x160xf32, #tpu.memory_space<vmem>>, vector<32x160xf32>
    %cst = arith.constant dense<0.000000e+00> : vector<16x160xf32>
    %2 = tpu.matmul %0, %1, %cst {dimension_numbers = #tpu.dot_dimension_numbers<[1], [0], [0], [1], [0, 0, 1, 1], [], []>} : vector<16x32xf32>, vector<32x160xf32>, vector<16x160xf32> -> vector<16x160xf32>
    %c0_3 = arith.constant 0 : index
    %c0_4 = arith.constant 0 : index
    %3 = vector.load %arg3[%c0_3, %c0_4] : memref<1x160xf32, #tpu.memory_space<vmem>>, vector<1x160xf32>
    %4 = vector.broadcast %3 : vector<1x160xf32> to vector<16x160xf32>
    %5 = arith.addf %2, %4 : vector<16x160xf32>
    %6 = vector.extract_strided_slice %5 {offsets = [0, 0], sizes = [16, 64], strides = [1, 1]} : vector<16x160xf32> to vector<16x64xf32>
    %cst_5 = arith.constant 0.000000e+00 : f32
    %7 = vector.broadcast %cst_5 : f32 to vector<16x64xf32>
    %8 = arith.maximumf %6, %7 : vector<16x64xf32>
    %9 = vector.extract_strided_slice %5 {offsets = [0, 64], sizes = [16, 64], strides = [1, 1]} : vector<16x160xf32> to vector<16x64xf32>
    %cst_6 = arith.constant 0.000000e+00 : f32
    %10 = vector.broadcast %cst_6 : f32 to vector<16x64xf32>
    %11 = arith.maximumf %9, %10 : vector<16x64xf32>
    %12 = vector.extract_strided_slice %5 {offsets = [0, 128], sizes = [16, 32], strides = [1, 1]} : vector<16x160xf32> to vector<16x32xf32>
    %13 = tpu.concatenate %8, %11 in 1 : vector<16x64xf32>, vector<16x64xf32> -> vector<16x128xf32>
    %c0_7 = arith.constant 0 : index
    %c0_8 = arith.constant 0 : index
    %14 = vector.load %arg4[%c0_7, %c0_8] : memref<128x64xf32, #tpu.memory_space<vmem>>, vector<128x64xf32>
    %cst_9 = arith.constant dense<0.000000e+00> : vector<16x64xf32>
    %15 = tpu.matmul %13, %14, %cst_9 {dimension_numbers = #tpu.dot_dimension_numbers<[1], [0], [0], [1], [0, 0, 1, 1], [], []>} : vector<16x128xf32>, vector<128x64xf32>, vector<16x64xf32> -> vector<16x64xf32>
    %c0_10 = arith.constant 0 : index
    %c0_11 = arith.constant 0 : index
    %16 = vector.load %arg5[%c0_10, %c0_11] : memref<1x64xf32, #tpu.memory_space<vmem>>, vector<1x64xf32>
    %17 = vector.broadcast %16 : vector<1x64xf32> to vector<16x64xf32>
    %18 = arith.addf %15, %17 : vector<16x64xf32>
    %19 = vector.extract_strided_slice %18 {offsets = [0, 0], sizes = [16, 32], strides = [1, 1]} : vector<16x64xf32> to vector<16x32xf32>
    %20 = arith.negf %19 : vector<16x32xf32>
    %21 = math.exp %20 : vector<16x32xf32>
    %cst_12 = arith.constant 1.000000e+00 : f32
    %22 = vector.broadcast %cst_12 : f32 to vector<16x32xf32>
    %23 = arith.addf %22, %21 : vector<16x32xf32>
    %24 = arith.divf %22, %23 : vector<16x32xf32>
    %25 = vector.extract_strided_slice %18 {offsets = [0, 32], sizes = [16, 32], strides = [1, 1]} : vector<16x64xf32> to vector<16x32xf32>
    %cst_13 = arith.constant 1.000000e+00 : f32
    %26 = vector.broadcast %cst_13 : f32 to vector<16x32xf32>
    %27 = arith.subf %26, %24 : vector<16x32xf32>
    %28 = arith.mulf %27, %12 : vector<16x32xf32>
    %29 = arith.mulf %24, %25 : vector<16x32xf32>
    %30 = arith.addf %28, %29 : vector<16x32xf32>
    %cst_14 = arith.constant 0.000000e+00 : f32
    %31 = vector.broadcast %cst_14 : f32 to vector<16x32xf32>
    %32 = arith.maximumf %25, %31 : vector<16x32xf32>
    %c0_15 = arith.constant 0 : index
    %c0_16 = arith.constant 0 : index
    %33 = vector.load %arg6[%c0_15, %c0_16] : memref<32x32xf32, #tpu.memory_space<vmem>>, vector<32x32xf32>
    %cst_17 = arith.constant dense<0.000000e+00> : vector<16x32xf32>
    %34 = tpu.matmul %32, %33, %cst_17 {dimension_numbers = #tpu.dot_dimension_numbers<[1], [0], [0], [1], [0, 0, 1, 1], [], []>} : vector<16x32xf32>, vector<32x32xf32>, vector<16x32xf32> -> vector<16x32xf32>
    %c0_18 = arith.constant 0 : index
    %c0_19 = arith.constant 0 : index
    %35 = vector.load %arg7[%c0_18, %c0_19] : memref<1x32xf32, #tpu.memory_space<vmem>>, vector<1x32xf32>
    %36 = vector.broadcast %35 : vector<1x32xf32> to vector<16x32xf32>
    %37 = arith.addf %34, %36 : vector<16x32xf32>
    %cst_20 = arith.constant 0.000000e+00 : f32
    %38 = vector.broadcast %cst_20 : f32 to vector<16x32xf32>
    %39 = arith.maximumf %37, %38 : vector<16x32xf32>
    %40 = vector.broadcast %cst_20 : f32 to vector<16x32xf32>
    %41 = arith.subf %37, %40 : vector<16x32xf32>
    %42 = arith.cmpf one, %41, %41 : vector<16x32xf32>
    %43 = vector.broadcast %cst_20 : f32 to vector<16x32xf32>
    %44 = arith.addf %37, %43 : vector<16x32xf32>
    %45 = math.absf %41 : vector<16x32xf32>
    %cst_21 = arith.constant 0.000000e+00 : f32
    %46 = vector.broadcast %cst_21 : f32 to vector<16x32xf32>
    %47 = arith.subf %46, %45 : vector<16x32xf32>
    %48 = math.exp %47 : vector<16x32xf32>
    %49 = math.log1p %48 : vector<16x32xf32>
    %50 = arith.addf %39, %49 : vector<16x32xf32>
    %51 = arith.select %42, %44, %50 : vector<16x32xi1>, vector<16x32xf32>
    %cst_22 = arith.constant 9.99999974E-5 : f32
    %52 = vector.broadcast %cst_22 : f32 to vector<16x32xf32>
    %53 = arith.maximumf %51, %52 : vector<16x32xf32>
    %54 = tpu.concatenate %30, %53 in 1 : vector<16x32xf32>, vector<16x32xf32> -> vector<16x64xf32>
    %c0_23 = arith.constant 0 : index
    %c0_24 = arith.constant 0 : index
    %55 = vector.load %arg8[%c0_23, %c0_24] : memref<16x64xf32, #tpu.memory_space<vmem>>, vector<16x64xf32>
    tpu.vector_store %arg8[%c0_23, %c0_24], %54 {strides = array<i32>} : memref<16x64xf32, #tpu.memory_space<vmem>>, vector<16x64xf32>,
    return
  }
  func.func @transform_0(%arg0: i32) -> (i32, i32) {
    %c0_i32 = arith.constant 0 : i32
    %c0_i32_0 = arith.constant 0 : i32
    return %arg0, %c0_i32 : i32, i32
  }
  func.func @transform_1(%arg0: i32) -> (i32, i32) {
    %c0_i32 = arith.constant 0 : i32
    %c0_i32_0 = arith.constant 0 : i32
    %c0_i32_1 = arith.constant 0 : i32
    return %c0_i32, %c0_i32_0 : i32, i32
  }
  func.func @transform_2(%arg0: i32) -> (i32, i32) {
    %c0_i32 = arith.constant 0 : i32
    %c0_i32_0 = arith.constant 0 : i32
    %c0_i32_1 = arith.constant 0 : i32
    return %c0_i32, %c0_i32_0 : i32, i32
  }
  func.func @transform_3(%arg0: i32) -> (i32, i32) {
    %c0_i32 = arith.constant 0 : i32
    %c0_i32_0 = arith.constant 0 : i32
    %c0_i32_1 = arith.constant 0 : i32
    return %c0_i32, %c0_i32_0 : i32, i32
  }
  func.func @transform_4(%arg0: i32) -> (i32, i32) {
    %c0_i32 = arith.constant 0 : i32
    %c0_i32_0 = arith.constant 0 : i32
    %c0_i32_1 = arith.constant 0 : i32
    return %c0_i32, %c0_i32_0 : i32, i32
  }
  func.func @transform_5(%arg0: i32) -> (i32, i32) {
    %c0_i32 = arith.constant 0 : i32
    %c0_i32_0 = arith.constant 0 : i32
    %c0_i32_1 = arith.constant 0 : i32
    return %c0_i32, %c0_i32_0 : i32, i32
  }
  func.func @transform_6(%arg0: i32) -> (i32, i32) {
    %c0_i32 = arith.constant 0 : i32
    %c0_i32_0 = arith.constant 0 : i32
    %c0_i32_1 = arith.constant 0 : i32
    return %c0_i32, %c0_i32_0 : i32, i32
  }
  func.func @transform_7(%arg0: i32) -> (i32, i32) {
    %c0_i32 = arith.constant 0 : i32
    %c0_i32_0 = arith.constant 0 : i32
    return %arg0, %c0_i32 : i32, i32
  }
}

</mosaic_0001>

<llo_original>
// kernel: tpu_custom_call.1
$region0: #{tpu_custom_call.1}
  #allocation0 [shape = 'u32[]', space=smem, size = 0x4, offset = 0x4, fixed_abs, tag = 'smem constant byte address 0x4 - core index']
  #allocation1 [shape = 'u32[144,128]{1,0:T(1,128)}', space=vmem, size = 0x12000, scoped, tag = 'internal scratch']
  %s0 = inlined_call_operand.vmem [shape: f32[16,32], index: 0, kind: input, shape index: {}]
  %s1 = inlined_call_operand.vmem [shape: f32[32,160], index: 1, kind: input, shape index: {}]
  %s2 = inlined_call_operand.vmem [shape: f32[1,160], index: 2, kind: input, shape index: {}]
  %s3 = inlined_call_operand.vmem [shape: f32[128,64], index: 3, kind: input, shape index: {}]
  %s4 = inlined_call_operand.vmem [shape: f32[1,64], index: 4, kind: input, shape index: {}]
  %s5 = inlined_call_operand.vmem [shape: f32[32,32], index: 5, kind: input, shape index: {}]
  %s6 = inlined_call_operand.vmem [shape: f32[1,32], index: 6, kind: input, shape index: {}]
  %s7 = inlined_call_operand.hbm [shape: f32[16,64], index: 7, kind: output, shape index: {}]
  %s8 = sld [smem:[#allocation0]]
  $region38: #{tpu_custom_call.1} parent=0
    _
  %s10 = ssub.s32 1, %s8
  %s11 = scalar_select 0, %s10, %s8
  $region1: #{tpu_custom_call.1} parent=0
    #allocation2 [shape = 'u8[8192]{0}', space=vmem, size = 0x2000, scoped, tag = 'output window, operand 0, single buffered']
    #allocation3 [shape = 's32[1]{0}', space=sflag, size = 0x4, scoped, tag = 'scoped memory for tpu_custom_call.1']
    %12 = vsyncpa [#allocation3], 0
    // Predicated region
    $region2: #{tpu_custom_call.1} parent=1 // pred_check
      _
    $region3: #{tpu_custom_call.1} parent=1 // pred_check_branch
      %14 = sbr.rel (0) target = $region5
    $region4: #{tpu_custom_call.1} parent=1 // pred_region
      _
    $region5: #{tpu_custom_call.1} parent=1 // pred_fallthru
      _
    // Predicated region
    $region6: #{tpu_custom_call.1} parent=1 // pred_check
      _
    $region7: #{tpu_custom_call.1} parent=1 // pred_check_branch
      %16 = sbr.rel (0) target = $region9
    $region8: #{tpu_custom_call.1} parent=1 // pred_region
      _
    $region9: #{tpu_custom_call.1} parent=1 // pred_fallthru
      _
    // Predicated region
    $region10: #{tpu_custom_call.1} parent=1 // pred_check
      _
    $region11: #{tpu_custom_call.1} parent=1 // pred_check_branch
      %18 = sbr.rel (0) target = $region13
    $region12: #{tpu_custom_call.1} parent=1 // pred_region
      _
    $region13: #{tpu_custom_call.1} parent=1 // pred_fallthru
      _
    // Predicated region
    $region14: #{tpu_custom_call.1} parent=1 // pred_check
      _
    $region15: #{tpu_custom_call.1} parent=1 // pred_check_branch
      %20 = sbr.rel (0) target = $region17
    $region16: #{tpu_custom_call.1} parent=1 // pred_region
      _
    $region17: #{tpu_custom_call.1} parent=1 // pred_fallthru
      _
    // Predicated region
    $region18: #{tpu_custom_call.1} parent=1 // pred_check
      _
    $region19: #{tpu_custom_call.1} parent=1 // pred_check_branch
      %22 = sbr.rel (0) target = $region21
    $region20: #{tpu_custom_call.1} parent=1 // pred_region
      _
    $region21: #{tpu_custom_call.1} parent=1 // pred_fallthru
      _
    // Predicated region
    $region22: #{tpu_custom_call.1} parent=1 // pred_check
      _
    $region23: #{tpu_custom_call.1} parent=1 // pred_check_branch
      %24 = sbr.rel (0) target = $region25
    $region24: #{tpu_custom_call.1} parent=1 // pred_region
      _
    $region25: #{tpu_custom_call.1} parent=1 // pred_fallthru
      _
    // Predicated region
    $region26: #{tpu_custom_call.1} parent=1 // pred_check
      _
    $region27: #{tpu_custom_call.1} parent=1 // pred_check_branch
      %26 = sbr.rel (0) target = $region29
    $region28: #{tpu_custom_call.1} parent=1 // pred_region
      _
    $region29: #{tpu_custom_call.1} parent=1 // pred_fallthru
      _
    %v27 = vld [vmem:[%s0] sm:$0xff]
    %v28 = vld [vmem:[%s0 + $0x8] sm:$0xff]
    %v29 = vld [vmem:[%s1] sm:$0xff]
    %v30 = vld [vmem:[%s1 + $0x8] sm:$0xff]
    %v31 = vld [vmem:[%s1 + $0x10] sm:$0xff]
    %v32 = vld [vmem:[%s1 + $0x18] sm:$0xff]
    %v33 = vld [vmem:[%s1 + $0x20] sm:$0xff]
    %v34 = vld [vmem:[%s1 + $0x28] sm:$0xff]
    %v35 = vld [vmem:[%s1 + $0x30] sm:$0xff]
    %v36 = vld [vmem:[%s1 + $0x38] sm:$0xff]
    %v37 = vld [vmem:[%s2] sm:$0x3]
    %v39 = vlaneseq
    %v40 = vshrl.u32 %v39, 7
    %v41 = vsub.s32 0, %v40
    %v42 = vrot.slane %v37, %v41
    %v43 = vlaneseq
    %v44 = vshrl.u32 %v43, 7
    %v45 = vsub.s32 1, %v44
    %v46 = vrot.slane %v37, %v45
    %vm49 = vcmask 261120
    %v51 = vsel %vm49, %v27, 0
    %v54 = vsel %vm49, %v28, 0
    %56 = vmatprep.subr.mxu0 %v30
    %57 = vmatpush1.msra.mxu0 %v29
    %58 = vmatprep.subr.mxu0 %v32
    %59 = vmatpush1.msra.mxu0 %v31
    %60 = vmatprep.subr.mxu0 %v34
    %61 = vmatpush1.msra.mxu0 %v33
    %62 = vmatprep.subr.mxu0 %v36
    %63 = vmatpush1.msra.mxu0 %v35
    %64 = vmatprep.subr.mxu0 0.0
    %65 = vmatpush1.msra.mxu0 0.0
    %66 = vmatprep.subr.mxu0 0.0
    %67 = vmatpush1.msra.mxu0 0.0
    %68 = vmatprep.subr.mxu0 0.0
    %69 = vmatpush1.msra.mxu0 0.0
    %70 = vmatprep.subr.mxu0 0.0
    %71 = vmatpush1.msra.mxu0 0.0
    %72 = vmatprep.subr.mxu0 0.0
    %73 = vmatpush1.msra.mxu0 0.0
    %74 = vmatprep.subr.mxu0 0.0
    %75 = vmatpush1.msra.mxu0 0.0
    %76 = vmatprep.subr.mxu0 0.0
    %77 = vmatpush1.msra.mxu0 0.0
    %78 = vmatprep.subr.mxu0 0.0
    %79 = vmatpush1.msra.mxu0 0.0
    %80 = vmatprep.subr.mxu0 0.0
    %81 = vmatpush1.msra.mxu0 0.0
    %82 = vmatprep.subr.mxu0 0.0
    %83 = vmatpush1.msra.mxu0 0.0
    %84 = vmatprep.subr.mxu0 0.0
    %85 = vmatpush1.msra.mxu0 0.0
    %86 = vmatprep.subr.mxu0 0.0
    %87 = vmatpush1.msra.mxu0 0.0
    %88 = vmatprep.subr.mxu0 0.0
    %89 = vmatpush1.msra.mxu0 0.0
    %90 = vmatprep.subr.mxu0 0.0
    %91 = vmatpush1.msra.mxu0 0.0
    %92 = vmatprep.subr.mxu0 0.0
    %93 = vmatpush1.msra.mxu0 0.0
    %94 = vmatprep.subr.mxu0 0.0
    %95 = vmatpush1.msra.mxu0 0.0
    %96 = vmatprep.subr.mxu0 0.0
    %97 = vmatpush1.msra.mxu0 0.0
    %98 = vmatprep.subr.mxu0 0.0
    %99 = vmatpush1.msra.mxu0 0.0
    %100 = vmatprep.subr.mxu0 0.0
    %101 = vmatpush1.msra.mxu0 0.0
    %102 = vmatprep.subr.mxu0 0.0
    %103 = vmatpush1.msra.mxu0 0.0
    %104 = vmatprep.subr.mxu0 0.0
    %105 = vmatpush1.msra.mxu0 0.0
    %106 = vmatprep.subr.mxu0 0.0
    %107 = vmatpush1.msra.mxu0 0.0
    %108 = vmatprep.subr.mxu0 0.0
    %109 = vmatpush1.msra.mxu0 0.0
    %110 = vmatprep.subr.mxu0 0.0
    %111 = vmatpush1.msra.mxu0 0.0
    %112 = vmatprep.subr.mxu0 0.0
    %113 = vmatpush1.msra.mxu0 0.0
    %114 = vmatprep.subr.mxu0 0.0
    %115 = vmatpush1.msra.mxu0 0.0
    %116 = vmatprep.subr.mxu0 0.0
    %117 = vmatpush1.msra.mxu0 0.0
    %118 = vmatprep.subr.mxu0 0.0
    %119 = vmatpush1.msra.mxu0 0.0
    %120 = vmatprep.mubr.f32.mxu0 0.0
    %121 = vmatmul.mubr.f32.gmra.mrb[0].mxu0 %v51
    %v122 = vpop.f32.mrb[0].mxu0
    %v123 = vadd.f32 %v42, %v122
    %v124 = vpop.f32.mrb[0].mxu0
    %v125 = vadd.f32 %v46, %v124
    %126 = vmatprep.mubr.f32.mxu0 0.0
    %127 = vmatmul.mubr.f32.gmra.mrb[0].mxu0 %v54
    %v128 = vpop.f32.mrb[0].mxu0
    %v129 = vadd.f32 %v42, %v128
    %v130 = vpop.f32.mrb[0].mxu0
    %v131 = vadd.f32 %v46, %v130
    %132 = vdwg.mxu0
    %v133 = vmax.f32 %v123, 0.0
    %v134 = vmax.f32 %v129, 0.0
    %vm135 = vcmask 523264
    %v136 = vld [vmem:[%s3] sm:$0xff]
    %v137 = vld [vmem:[%s3 + $0x8] sm:$0xff]
    %v138 = vld [vmem:[%s3 + $0x10] sm:$0xff]
    %v139 = vld [vmem:[%s3 + $0x18] sm:$0xff]
    %v140 = vld [vmem:[%s3 + $0x20] sm:$0xff]
    %v141 = vld [vmem:[%s3 + $0x28] sm:$0xff]
    %v142 = vld [vmem:[%s3 + $0x30] sm:$0xff]
    %v143 = vld [vmem:[%s3 + $0x38] sm:$0xff]
    %v144 = vld [vmem:[%s3 + $0x40] sm:$0xff]
    %v145 = vld [vmem:[%s3 + $0x48] sm:$0xff]
    %v146 = vld [vmem:[%s3 + $0x50] sm:$0xff]
    %v147 = vld [vmem:[%s3 + $0x58] sm:$0xff]
    %v148 = vld [vmem:[%s3 + $0x60] sm:$0xff]
    %v149 = vld [vmem:[%s3 + $0x68] sm:$0xff]
    %v150 = vld [vmem:[%s3 + $0x70] sm:$0xff]
    %v151 = vld [vmem:[%s3 + $0x78] sm:$0xff]
    %v152 = vld [vmem:[%s4] sm:$0x1]
    %v154 = vlaneseq
    %v155 = vshrl.u32 %v154, 7
    %v156 = vsub.s32 0, %v155
    %v157 = vrot.slane %v152, %v156
    %159 = vmatprep.subr.mxu0 0.0
    %160 = vmatpush1.msra.mxu0 %v136
    %161 = vmatprep.subr.mxu0 0.0
    %162 = vmatpush1.msra.mxu0 %v137
    %163 = vmatprep.subr.mxu0 0.0
    %164 = vmatpush1.msra.mxu0 %v138
    %165 = vmatprep.subr.mxu0 0.0
    %166 = vmatpush1.msra.mxu0 %v139
    %167 = vmatprep.subr.mxu0 0.0
    %168 = vmatpush1.msra.mxu0 %v140
    %169 = vmatprep.subr.mxu0 0.0
    %170 = vmatpush1.msra.mxu0 %v141
    %171 = vmatprep.subr.mxu0 0.0
    %172 = vmatpush1.msra.mxu0 %v142
    %173 = vmatprep.subr.mxu0 0.0
    %174 = vmatpush1.msra.mxu0 %v143
    %175 = vmatprep.subr.mxu0 0.0
    %176 = vmatpush1.msra.mxu0 %v144
    %177 = vmatprep.subr.mxu0 0.0
    %178 = vmatpush1.msra.mxu0 %v145
    %179 = vmatprep.subr.mxu0 0.0
    %180 = vmatpush1.msra.mxu0 %v146
    %181 = vmatprep.subr.mxu0 0.0
    %182 = vmatpush1.msra.mxu0 %v147
    %183 = vmatprep.subr.mxu0 0.0
    %184 = vmatpush1.msra.mxu0 %v148
    %185 = vmatprep.subr.mxu0 0.0
    %186 = vmatpush1.msra.mxu0 %v149
    %187 = vmatprep.subr.mxu0 0.0
    %188 = vmatpush1.msra.mxu0 %v150
    %189 = vmatprep.subr.mxu0 0.0
    %190 = vmatpush1.msra.mxu0 %v151
    %191 = vmatprep.subr.mxu0 0.0
    %192 = vmatpush1.msra.mxu0 0.0
    %193 = vmatprep.subr.mxu0 0.0
    %194 = vmatpush1.msra.mxu0 0.0
    %195 = vmatprep.subr.mxu0 0.0
    %196 = vmatpush1.msra.mxu0 0.0
    %197 = vmatprep.subr.mxu0 0.0
    %198 = vmatpush1.msra.mxu0 0.0
    %199 = vmatprep.subr.mxu0 0.0
    %200 = vmatpush1.msra.mxu0 0.0
    %201 = vmatprep.subr.mxu0 0.0
    %202 = vmatpush1.msra.mxu0 0.0
    %203 = vmatprep.subr.mxu0 0.0
    %204 = vmatpush1.msra.mxu0 0.0
    %205 = vmatprep.subr.mxu0 0.0
    %206 = vmatpush1.msra.mxu0 0.0
    %207 = vmatprep.subr.mxu0 0.0
    %208 = vmatpush1.msra.mxu0 0.0
    %209 = vmatprep.subr.mxu0 0.0
    %210 = vmatpush1.msra.mxu0 0.0
    %211 = vmatprep.subr.mxu0 0.0
    %212 = vmatpush1.msra.mxu0 0.0
    %213 = vmatprep.subr.mxu0 0.0
    %214 = vmatpush1.msra.mxu0 0.0
    %215 = vmatprep.subr.mxu0 0.0
    %216 = vmatpush1.msra.mxu0 0.0
    %217 = vmatprep.subr.mxu0 0.0
    %218 = vmatpush1.msra.mxu0 0.0
    %219 = vmatprep.subr.mxu0 0.0
    %220 = vmatpush1.msra.mxu0 0.0
    %221 = vmatprep.subr.mxu0 0.0
    %222 = vmatpush1.msra.mxu0 0.0
    %223 = vmatprep.mubr.f32.mxu0 0.0
    %224 = vmatmul.mubr.f32.gmra.mrb[0].mxu0 %v133
    %v225 = vpop.f32.mrb[0].mxu0
    %v226 = vadd.f32 %v157, %v225
    %v227 = vpop.f32.mrb[0].mxu0
    %228 = vmatprep.mubr.f32.mxu0 0.0
    %229 = vmatmul.mubr.f32.gmra.mrb[0].mxu0 %v134
    %v230 = vpop.f32.mrb[0].mxu0
    %v231 = vadd.f32 %v157, %v230
    %v232 = vpop.f32.mrb[0].mxu0
    %233 = vdwg.mxu0
    %v234 = vxor.u32 %v226, 2147483648
    %v235 = vxor.u32 %v231, 2147483648
    %v236 = vmul.f32 %v234, 1.442695
    %v237 = vpow.pop %v236
    %v238 = vmul.f32 %v235, 1.442695
    %v239 = vpow.pop %v238
    %v240 = vadd.f32 %v237, 1.0
    %v241 = vadd.f32 %v239, 1.0
    %v242 = vrcp.pop %v240
    %v243 = vmul.f32 1.0, %v242
    %v244 = vrcp.pop %v241
    %v245 = vmul.f32 1.0, %v244
    %v246 = vsub.f32 1.0, %v243
    %v247 = vsub.f32 1.0, %v245
    %v248 = vmul.f32 %v246, %v125
    %v249 = vmul.f32 %v247, %v131
    %252 = vrot.lane.b32.xlu0 %v226, 96
    %v253 = vpop.permute.xlu0 %252
    %254 = vrot.lane.b32.xlu0 %v231, 96
    %v255 = vpop.permute.xlu0 %254
    %v258 = vmul.f32 %v243, %v253
    %v259 = vmul.f32 %v245, %v255
    %v260 = vadd.f32 %v248, %v258
    %v261 = vadd.f32 %v249, %v259
    %v262 = vmax.f32 %v226, 0.0
    %v263 = vmax.f32 %v231, 0.0
    %v264 = vld [vmem:[%s5] sm:$0xff]
    %v265 = vld [vmem:[%s5 + $0x8] sm:$0xff]
    %v266 = vld [vmem:[%s5 + $0x10] sm:$0xff]
    %v267 = vld [vmem:[%s5 + $0x18] sm:$0xff]
    %v268 = vld [vmem:[%s6] sm:$0x1]
    %v270 = vlaneseq
    %v271 = vshrl.u32 %v270, 7
    %v272 = vsub.s32 0, %v271
    %v273 = vrot.slane %v268, %v272
    %277 = vrot.lane.b32.xlu0 %v262, 96
    %v278 = vpop.permute.xlu0 %277
    %279 = vrot.lane.b32.xlu0 %v263, 96
    %v280 = vpop.permute.xlu0 %279
    %v281 = vsel %vm49, %v278, 0
    %v283 = vsel %vm49, %v280, 0
    %285 = vmatprep.subr.mxu0 0.0
    %286 = vmatpush1.msra.mxu0 %v264
    %287 = vmatprep.subr.mxu0 0.0
    %288 = vmatpush1.msra.mxu0 %v265
    %289 = vmatprep.subr.mxu0 0.0
    %290 = vmatpush1.msra.mxu0 %v266
    %291 = vmatprep.subr.mxu0 0.0
    %292 = vmatpush1.msra.mxu0 %v267
    %293 = vmatprep.subr.mxu0 0.0
    %294 = vmatpush1.msra.mxu0 0.0
    %295 = vmatprep.subr.mxu0 0.0
    %296 = vmatpush1.msra.mxu0 0.0
    %297 = vmatprep.subr.mxu0 0.0
    %298 = vmatpush1.msra.mxu0 0.0
    %299 = vmatprep.subr.mxu0 0.0
    %300 = vmatpush1.msra.mxu0 0.0
    %301 = vmatprep.subr.mxu0 0.0
    %302 = vmatpush1.msra.mxu0 0.0
    %303 = vmatprep.subr.mxu0 0.0
    %304 = vmatpush1.msra.mxu0 0.0
    %305 = vmatprep.subr.mxu0 0.0
    %306 = vmatpush1.msra.mxu0 0.0
    %307 = vmatprep.subr.mxu0 0.0
    %308 = vmatpush1.msra.mxu0 0.0
    %309 = vmatprep.subr.mxu0 0.0
    %310 = vmatpush1.msra.mxu0 0.0
    %311 = vmatprep.subr.mxu0 0.0
    %312 = vmatpush1.msra.mxu0 0.0
    %313 = vmatprep.subr.mxu0 0.0
    %314 = vmatpush1.msra.mxu0 0.0
    %315 = vmatprep.subr.mxu0 0.0
    %316 = vmatpush1.msra.mxu0 0.0
    %317 = vmatprep.subr.mxu0 0.0
    %318 = vmatpush1.msra.mxu0 0.0
    %319 = vmatprep.subr.mxu0 0.0
    %320 = vmatpush1.msra.mxu0 0.0
    %321 = vmatprep.subr.mxu0 0.0
    %322 = vmatpush1.msra.mxu0 0.0
    %323 = vmatprep.subr.mxu0 0.0
    %324 = vmatpush1.msra.mxu0 0.0
    %325 = vmatprep.subr.mxu0 0.0
    %326 = vmatpush1.msra.mxu0 0.0
    %327 = vmatprep.subr.mxu0 0.0
    %328 = vmatpush1.msra.mxu0 0.0
    %329 = vmatprep.subr.mxu0 0.0
    %330 = vmatpush1.msra.mxu0 0.0
    %331 = vmatprep.subr.mxu0 0.0
    %332 = vmatpush1.msra.mxu0 0.0
    %333 = vmatprep.subr.mxu0 0.0
    %334 = vmatpush1.msra.mxu0 0.0
    %335 = vmatprep.subr.mxu0 0.0
    %336 = vmatpush1.msra.mxu0 0.0
    %337 = vmatprep.subr.mxu0 0.0
    %338 = vmatpush1.msra.mxu0 0.0
    %339 = vmatprep.subr.mxu0 0.0
    %340 = vmatpush1.msra.mxu0 0.0
    %341 = vmatprep.subr.mxu0 0.0
    %342 = vmatpush1.msra.mxu0 0.0
    %343 = vmatprep.subr.mxu0 0.0
    %344 = vmatpush1.msra.mxu0 0.0
    %345 = vmatprep.subr.mxu0 0.0
    %346 = vmatpush1.msra.mxu0 0.0
    %347 = vmatprep.subr.mxu0 0.0
    %348 = vmatpush1.msra.mxu0 0.0
    %349 = vmatprep.mubr.f32.mxu0 0.0
    %350 = vmatmul.mubr.f32.gmra.mrb[0].mxu0 %v281
    %v351 = vpop.f32.mrb[0].mxu0
    %v352 = vadd.f32 %v273, %v351
    %v353 = vpop.f32.mrb[0].mxu0
    %354 = vmatprep.mubr.f32.mxu0 0.0
    %355 = vmatmul.mubr.f32.gmra.mrb[0].mxu0 %v283
    %v356 = vpop.f32.mrb[0].mxu0
    %v357 = vadd.f32 %v273, %v356
    %v358 = vpop.f32.mrb[0].mxu0
    %359 = vdwg.mxu0
    %v360 = vmax.f32 %v352, 0.0
    %v361 = vmax.f32 %v357, 0.0
    %vm362 = vcmp.ne.f32.partialorder %v352, %v352
    %vm363 = vcmp.ne.f32.partialorder %v357, %v357
    %v364 = vadd.f32 %v352, 0.0
    %v365 = vadd.f32 %v357, 0.0
    %v366 = vand.u32 2147483647, %v352
    %v367 = vand.u32 2147483647, %v357
    %v368 = vsub.f32 0.0, %v366
    %v369 = vsub.f32 0.0, %v367
    %v370 = vmul.f32 %v368, 1.442695
    %v371 = vpow.pop %v370
    %v372 = vmul.f32 %v369, 1.442695
    %v373 = vpow.pop %v372
    %v374 = vadd.f32 %v371, 1.0
    %v375 = vlog2.pop %v374
    %v376 = vmul.f32 %v375, 0.6931472
    %v377 = vmul.f32 -0.5, %v371
    %v378 = vadd.f32 %v377, 1.0
    %v379 = vmul.f32 %v378, %v371
    %v380 = vand.u32 2147483647, %v371
    %vm381 = vcmp.lt.f32.partialorder %v380, 0.0004427343
    %v382 = vsel %vm381, %v379, %v376
    %v383 = vadd.f32 %v373, 1.0
    %v384 = vlog2.pop %v383
    %v385 = vmul.f32 %v384, 0.6931472
    %v386 = vmul.f32 -0.5, %v373
    %v387 = vadd.f32 %v386, 1.0
    %v388 = vmul.f32 %v387, %v373
    %v389 = vand.u32 2147483647, %v373
    %vm390 = vcmp.lt.f32.partialorder %v389, 0.0004427343
    %v391 = vsel %vm390, %v388, %v385
    %v392 = vadd.f32 %v360, %v382
    %v393 = vadd.f32 %v361, %v391
    %v394 = vsel %vm362, %v364, %v392
    %v395 = vsel %vm363, %v365, %v393
    %v396 = vmax.f32 %v394, 0.0001
    %v397 = vmax.f32 %v395, 0.0001
    %400 = vrot.lane.b32.xlu0 %v396, 32
    %v401 = vpop.permute.xlu0 %400
    %402 = vrot.lane.b32.xlu0 %v397, 32
    %v403 = vpop.permute.xlu0 %402
    %v406 = vsel %vm49, %v260, %v401
    %v407 = vsel %vm49, %v261, %v403
    %408 = vst.msk [vmem:[#allocation2] sm:$0xff] %vm135, %v406
    %409 = vst.msk [vmem:[#allocation2 + $0x8] sm:$0xff] %vm135, %v407
    // Predicated region
    $region30: #{tpu_custom_call.1} parent=1 // pred_check
      _
    $region31: #{tpu_custom_call.1} parent=1 // pred_check_branch
      %411 = sbr.rel (0) target = $region33
    $region32: #{tpu_custom_call.1} parent=1 // pred_region
      %s413 = ssub.s32 256, 256
      %414 = vsyncadd [#allocation3], %s413
      %s415 = sshll.u32 [#allocation2], 4
      %s416 = int_to_ptr.vmem [resolvable:$true] %s415
      %421 = dma.vmem_to_hbm [thread:$0]  %s416, 256, %s7, [#allocation3], 128, 128, 8
    $region33: #{tpu_custom_call.1} parent=1 // pred_fallthru
      _
    // Predicated region
    $region34: #{tpu_custom_call.1} parent=1 // pred_check
      _
    $region35: #{tpu_custom_call.1} parent=1 // pred_check_branch
      %423 = sbr.rel (0) target = $region37
    $region36: #{tpu_custom_call.1} parent=1 // pred_region
      %424 = dma.done [#allocation3], 256
    $region37: #{tpu_custom_call.1} parent=1 // pred_fallthru
      _
    %425 = vsyncpa [#allocation3], 1

</llo_original>
